<compile_context>
chip_gen: v5e
topology: v5e:2x2
jax: 0.10.0
libtpu: 0.0.40
codegen_flags: <defaults>
</compile_context>

<pallas_src>
import functools

import jax
import jax.numpy as jnp
from jax.experimental import pallas as pl
from jax.experimental.pallas import tpu as pltpu

EPS = 1e-6
_LANE = 128
_MAX_TILE_LANES = 65536          # upper bound on the spatial tile (lanes)


def _physical_vmem_bytes():
    try:
        return int(pltpu.get_tpu_info().vmem_capacity_bytes)
    except Exception:
        return 64 << 20          # conservative (v7x-sized) fallback

_PHYS_VMEM = _physical_vmem_bytes()


def _combined_loss_kernel(y_pred_ref, y_true_ref,
                          ce_ref, inter_ref, union_ref,
                          ce_vec, inter_acc, union_acc,
                          *, hw, tile, tiles_per_chunk, n_chunks,
                          compute_ce, compute_dice, any_mask):
    g = pl.program_id(0)
    t = pl.program_id(1)
    t_last = tiles_per_chunk - 1

    @pl.when(t == 0)
    def _init():
        if compute_ce:
            ce_vec[...] = jnp.zeros_like(ce_vec)
        if compute_dice:
            inter_acc[...] = jnp.zeros_like(inter_acc)
            union_acc[...] = jnp.zeros_like(union_acc)

    # Global spatial tile index / element offset of this grid step.
    if n_chunks > 1:
        global_tile = (g % n_chunks) * tiles_per_chunk + t
    else:
        global_tile = t
    offset = global_tile * tile

    def accumulate(masked):
        logits = y_pred_ref[0].astype(jnp.float32)            # (C, TILE)
        labels = y_true_ref[0].astype(jnp.int32)              # (1, TILE)
        class_ids = jax.lax.broadcasted_iota(jnp.int32, logits.shape, 0)
        onehot_b = class_ids == labels                         # (C, TILE) bool

        if masked:
            lane = jax.lax.broadcasted_iota(jnp.int32, (1, tile), 1)
            valid = (offset + lane) < hw                       # (1, TILE) bool
            maskf = valid.astype(jnp.float32)
            # Stale lanes of a partial block may hold NaN/Inf: select, don't mul.
            logits = jnp.where(valid, logits, 0.0)
            onehot_b = onehot_b & valid

        # Softmax statistics over the class (sublane) axis.
        m = jnp.max(logits, axis=0, keepdims=True)             # (1, TILE)
        ex = jnp.exp(logits - m)                               # (C, TILE)
        denom = jnp.sum(ex, axis=0, keepdims=True)             # (1, TILE)

        if compute_ce:
            lse = m + jnp.log(denom)                           # (1, TILE)
            logit_true = jnp.sum(jnp.where(onehot_b, logits, 0.0),
                                 axis=0, keepdims=True)
            ce_term = lse - logit_true
            if masked:
                ce_term = ce_term * maskf
            ce_vec[...] += ce_term                             # VPU-only accum

        if compute_dice:
            probs = ex * pl.reciprocal(denom)                  # exact (tolerance)
            if masked:
                probs = probs * maskf
            # Element-wise (C, TILE) accumulation; XLU lane reduce deferred
            # to the per-sample epilogue.
            inter_acc[...] += jnp.where(onehot_b, probs, 0.0)
            union_acc[...] += probs + onehot_b.astype(jnp.float32)

    if any_mask:
        @pl.when(offset + tile <= hw)
        def _full_tile():
            accumulate(False)

        @pl.when(offset + tile > hw)
        def _partial_tile():
            accumulate(True)
    else:
        accumulate(False)

    @pl.when(t == t_last)
    def _finalize():
        if compute_ce:
            ce_ref[...] = jnp.sum(ce_vec[...], keepdims=True
                                  ).reshape(ce_ref.shape)
        else:
            ce_ref[...] = jnp.zeros_like(ce_ref)
        if compute_dice:
            inter_ref[...] = jnp.sum(inter_acc[...], axis=1, keepdims=True
                                     ).reshape(inter_ref.shape)
            union_ref[...] = jnp.sum(union_acc[...], axis=1, keepdims=True
                                     ).reshape(union_ref.shape)
        else:
            inter_ref[...] = jnp.zeros_like(inter_ref)
            union_ref[...] = jnp.zeros_like(union_ref)


@functools.partial(jax.jit,
                   static_argnames=("loss_mode", "return_all_losses",
                                    "max_lanes_per_tile"))
def combined_loss(y_pred, y_true, loss_mode="CE", return_all_losses=False,
                  max_lanes_per_tile=None):
    """Pallas implementation of CombinedLoss.forward (weights=None path).

    y_pred: (N, C, H, W) logits; y_true: (N, H, W) or (N, 1, H, W) int labels.
    """
    assert loss_mode in ("CE", "dice", "CE-dice")
    alpha = {"CE": 1.0, "dice": 0.0, "CE-dice": 0.5}[loss_mode]
    # TODO(synk): class `weights`, 'groups' and 'macroF*' modes not implemented.
    compute_ce = (alpha > 0.0) or return_all_losses
    compute_dice = (alpha < 1.0) or return_all_losses

    if y_true.ndim == 4:
        y_true = y_true[:, 0]
    N, C, H, W = y_pred.shape
    HW = H * W

    yp = y_pred.reshape(N, C, HW)                 # native dtype, no extra copy
    # Keep narrow integer label dtypes (8/16-bit) — cast to int32 in-kernel.
    if (not jnp.issubdtype(y_true.dtype, jnp.integer)
            or y_true.dtype.itemsize > 4):
        y_true = y_true.astype(jnp.int32)
    yt = y_true.reshape(N, 1, HW)

    # ---- tile sizing against the real per-step VMEM footprint --------------
    vmem_budget = min(int(_PHYS_VMEM * 0.55), 72 << 20)   # v7x ~35M, v5e/v6e 72M
    vmem_limit = min(int(_PHYS_VMEM * 0.75), 100 << 20)   # v7x ~48M, v5e/v6e 100M

    in_b = 2 * (C * yp.dtype.itemsize + yt.dtype.itemsize)  # double-buffered in
    scratch_b = 4 * (1 + 2 * C)                             # CE vec + dice accs
    temps_b = 4 * (6 * C + 6)                               # live f32 temporaries
    bytes_per_lane = in_b + scratch_b + temps_b

    hw128 = pl.cdiv(HW, _LANE) * _LANE
    tile = max(_LANE, (vmem_budget // bytes_per_lane) // _LANE * _LANE)
    tile = min(tile, _MAX_TILE_LANES, hw128)
    if max_lanes_per_tile is not None:
        tile = max(_LANE, min(tile, max_lanes_per_tile // _LANE * _LANE))
    total_tiles = pl.cdiv(HW, tile)
    # Rebalance so the last (partial) tile is not disproportionately small.
    tile = pl.cdiv(pl.cdiv(HW, total_tiles), _LANE) * _LANE
    total_tiles = pl.cdiv(HW, tile)

    # For N == 1 split each sample's spatial reduction into 2 chunks so both
    # v7x TensorCores get work on the parallel axis; partials summed in JAX.
    n_chunks = 2 if (N == 1 and total_tiles >= 2) else 1
    tiles_per_chunk = pl.cdiv(total_tiles, n_chunks)
    any_mask = (n_chunks * tiles_per_chunk * tile) != HW

    if n_chunks == 1:
        def sample_idx(g):
            return g

        def spatial_idx(g, t):
            return t
    else:
        def sample_idx(g):
            return g // n_chunks

        def spatial_idx(g, t):
            gt = (g % n_chunks) * tiles_per_chunk + t
            return jnp.minimum(gt, total_tiles - 1)   # clamp fully-OOB tiles

    kernel = functools.partial(
        _combined_loss_kernel, hw=HW, tile=tile,
        tiles_per_chunk=tiles_per_chunk, n_chunks=n_chunks,
        compute_ce=compute_ce, compute_dice=compute_dice, any_mask=any_mask)

    NG = N * n_chunks
    out_shapes = (jax.ShapeDtypeStruct((NG, 1, 1), jnp.float32),  # CE pixel-sum
                  jax.ShapeDtypeStruct((NG, C, 1), jnp.float32),  # dice inter
                  jax.ShapeDtypeStruct((NG, C, 1), jnp.float32))  # dice union

    ce_part, inter, union = pl.pallas_call(
        kernel,
        out_shape=out_shapes,
        grid_spec=pltpu.PrefetchScalarGridSpec(
            num_scalar_prefetch=0,
            grid=(NG, tiles_per_chunk),
            in_specs=[
                pl.BlockSpec((1, C, tile),
                             lambda g, t: (sample_idx(g), 0, spatial_idx(g, t))),
                pl.BlockSpec((1, 1, tile),
                             lambda g, t: (sample_idx(g), 0, spatial_idx(g, t))),
            ],
            out_specs=[
                pl.BlockSpec((1, 1, 1), lambda g, t: (g, 0, 0)),
                pl.BlockSpec((1, C, 1), lambda g, t: (g, 0, 0)),
                pl.BlockSpec((1, C, 1), lambda g, t: (g, 0, 0)),
            ],
            scratch_shapes=[
                pltpu.VMEM((1, tile), jnp.float32),   # per-sample CE vector acc
                pltpu.VMEM((C, tile), jnp.float32),   # per-sample intersection
                pltpu.VMEM((C, tile), jnp.float32),   # per-sample union
            ]),
        compiler_params=pltpu.CompilerParams(
            dimension_semantics=("parallel", "arbitrary"),
            vmem_limit_bytes=vmem_limit),
    )(yp, yt)

    # ---- tiny finalize in plain JAX (O(N*C) work) ---------------------------
    if compute_ce:
        ce = jnp.sum(ce_part) / (N * HW)
    else:
        ce = jnp.float32(0.0)
    if compute_dice:
        inter_s = inter.reshape(N, n_chunks, C).sum(axis=1)
        union_s = union.reshape(N, n_chunks, C).sum(axis=1)
        dice = (2.0 * inter_s + EPS) / (union_s + EPS)
        dice_loss = 1.0 - jnp.mean(dice)
    else:
        dice_loss = jnp.float32(0.0)

    if alpha == 1.0:
        loss = ce
    elif alpha == 0.0:
        loss = dice_loss
    else:
        loss = alpha * ce + (1.0 - alpha) * dice_loss

    if return_all_losses:
        return loss, ce, dice_loss
    return loss


def _reference(y_pred, y_true, loss_mode="CE"):
    """Pure-JAX reference matching the PyTorch forward (weights=None)."""
    alpha = {"CE": 1.0, "dice": 0.0, "CE-dice": 0.5}[loss_mode]
    N, C, H, W = y_pred.shape
    logits = y_pred.astype(jnp.float32)
    lse = jax.scipy.special.logsumexp(logits, axis=1)                  # (N,H,W)
    logit_true = jnp.take_along_axis(
        logits, y_true[:, None].astype(jnp.int32), axis=1)[:, 0]       # (N,H,W)
    ce = jnp.mean(lse - logit_true)
    probs = jax.nn.softmax(logits, axis=1)
    onehot = jax.nn.one_hot(y_true, C, axis=1, dtype=jnp.float32)
    inter = jnp.sum(probs * onehot, axis=(2, 3))
    union = jnp.sum(probs + onehot, axis=(2, 3))
    dice = (2.0 * inter + EPS) / (union + EPS)
    dice_loss = 1.0 - jnp.mean(dice)
    return alpha * ce + (1.0 - alpha) * dice_loss, ce, dice_loss


if __name__ == "__main__":
    key = jax.random.PRNGKey(0)
    cases = [
        # (shape, label dtype, forced max lanes per tile)
        ((2, 5, 16, 16), jnp.int32, None),   # HW multiple of 128: no masking
        ((2, 4, 10, 13), jnp.int32, None),   # ragged HW: masked partial tile
        ((2, 5, 16, 16), jnp.int8, None),    # narrow-label passthrough
        ((1, 3, 24, 30), jnp.int32, 256),    # N=1: chunked parallel axis + clamp
    ]
    for (N, C, H, W), lab_dtype, max_lanes in cases:
        k1, k2 = jax.random.split(jax.random.fold_in(key, N * 1000 + H * W))
        y_pred = jax.random.normal(k1, (N, C, H, W), dtype=jnp.float32)
        y_true = jax.random.randint(k2, (N, H, W), 0, C, dtype=jnp.int32)
        y_true_in = y_true.astype(lab_dtype)

        for mode in ("CE", "dice", "CE-dice"):
            got = jax.block_until_ready(
                combined_loss(y_pred, y_true_in, loss_mode=mode,
                              max_lanes_per_tile=max_lanes))
            want = _reference(y_pred, y_true, loss_mode=mode)[0]
            assert jnp.allclose(got, want, rtol=1e-5, atol=1e-5), (
                mode, (N, C, H, W), got, want)

        got_all = jax.block_until_ready(
            combined_loss(y_pred, y_true_in, loss_mode="CE-dice",
                          return_all_losses=True,
                          max_lanes_per_tile=max_lanes))
        want_all = _reference(y_pred, y_true, loss_mode="CE-dice")
        for gv, wv in zip(got_all, want_all):
            assert jnp.allclose(gv, wv, rtol=1e-5, atol=1e-5), (gv, wv)

    print("KERNEL_OK")
</pallas_src>

<mosaic_0001>
module attributes {stable_mosaic.version = 11 : i64} {
  func.func @_combined_loss_kernel(%arg0: i32, %arg1: i32, %arg2: memref<1x5x256xf32, #tpu.memory_space<vmem>>, %arg3: memref<1x1x256xi32, #tpu.memory_space<vmem>>, %arg4: memref<1x1x1xf32, #tpu.memory_space<vmem>>, %arg5: memref<1x5x1xf32, #tpu.memory_space<vmem>>, %arg6: memref<1x5x1xf32, #tpu.memory_space<vmem>>, %arg7: memref<1x256xf32, #tpu.memory_space<vmem>>, %arg8: memref<5x256xf32, #tpu.memory_space<vmem>>, %arg9: memref<5x256xf32, #tpu.memory_space<vmem>>) attributes {dimension_semantics = [#tpu.dimension_semantics<parallel>, #tpu.dimension_semantics<arbitrary>], iteration_bounds = array<i64: 2, 1>, scalar_prefetch = 0 : i64, scratch_operands = 3 : i64, tpu.core_type = #tpu.core_type<tc>, window_params = [{transform_indices = @transform_0, window_bounds = array<i64: 1, 5, 256>}, {transform_indices = @transform_1, window_bounds = array<i64: 1, 1, 256>}, {transform_indices = @transform_2, window_bounds = array<i64: 1, 1, 1>}, {transform_indices = @transform_3, window_bounds = array<i64: 1, 5, 1>}, {transform_indices = @transform_4, window_bounds = array<i64: 1, 5, 1>}]} {
    %c0_i32 = arith.constant 0 : i32
    %0 = arith.cmpi eq, %arg1, %c0_i32 : i32
    %1 = arith.extui %0 : i1 to i32
    %c0_i32_0 = arith.constant 0 : i32
    %2 = arith.cmpi ne, %1, %c0_i32_0 : i32
    scf.if %2 {
      %cst_15 = arith.constant 0.000000e+00 : f32
      %30 = vector.broadcast %cst_15 : f32 to vector<1x256xf32>
      %c0_16 = arith.constant 0 : index
      %c0_17 = arith.constant 0 : index
      %31 = vector.load %arg7[%c0_16, %c0_17] : memref<1x256xf32, #tpu.memory_space<vmem>>, vector<1x256xf32>
      tpu.vector_store %arg7[%c0_16, %c0_17], %30 {strides = array<i32>} : memref<1x256xf32, #tpu.memory_space<vmem>>, vector<1x256xf32>,
    } else {
    }
    %c0 = arith.constant 0 : index
    %c0_1 = arith.constant 0 : index
    %c0_2 = arith.constant 0 : index
    %3 = vector.load %arg2[%c0, %c0_1, %c0_2] : memref<1x5x256xf32, #tpu.memory_space<vmem>>, vector<1x5x256xf32>
    %4 = vector.shape_cast %3 : vector<1x5x256xf32> to vector<5x256xf32>
    %c0_3 = arith.constant 0 : index
    %c0_4 = arith.constant 0 : index
    %c0_5 = arith.constant 0 : index
    %5 = vector.load %arg3[%c0_3, %c0_4, %c0_5] : memref<1x1x256xi32, #tpu.memory_space<vmem>>, vector<1x1x256xi32>
    %6 = vector.shape_cast %5 : vector<1x1x256xi32> to vector<1x256xi32>
    %7 = tpu.iota {dimensions = array<i32: 0>} : vector<5x256xi32>
    %8 = vector.broadcast %6 : vector<1x256xi32> to vector<5x256xi32>
    %9 = arith.cmpi eq, %7, %8 : vector<5x256xi32>
    %cst = arith.constant dense<0xFF800000> : vector<256xf32>
    %10 = vector.multi_reduction <maximumf>, %4, %cst [0] : vector<5x256xf32> to vector<256xf32>
    %11 = vector.shape_cast %10 : vector<256xf32> to vector<1x256xf32>
    %12 = vector.broadcast %11 : vector<1x256xf32> to vector<5x256xf32>
    %13 = arith.subf %4, %12 : vector<5x256xf32>
    %14 = math.exp %13 : vector<5x256xf32>
    %cst_6 = arith.constant dense<0.000000e+00> : vector<256xf32>
    %15 = vector.multi_reduction <add>, %14, %cst_6 [0] : vector<5x256xf32> to vector<256xf32>
    %16 = vector.shape_cast %15 : vector<256xf32> to vector<1x256xf32>
    %17 = math.log %16 : vector<1x256xf32>
    %18 = arith.addf %11, %17 : vector<1x256xf32>
    %cst_7 = arith.constant 0.000000e+00 : f32
    %19 = vector.broadcast %cst_7 : f32 to vector<5x256xf32>
    %20 = arith.select %9, %4, %19 : vector<5x256xi1>, vector<5x256xf32>
    %cst_8 = arith.constant dense<0.000000e+00> : vector<256xf32>
    %21 = vector.multi_reduction <add>, %20, %cst_8 [0] : vector<5x256xf32> to vector<256xf32>
    %22 = vector.shape_cast %21 : vector<256xf32> to vector<1x256xf32>
    %23 = arith.subf %18, %22 : vector<1x256xf32>
    %c0_9 = arith.constant 0 : index
    %c0_10 = arith.constant 0 : index
    %24 = vector.load %arg7[%c0_9, %c0_10] : memref<1x256xf32, #tpu.memory_space<vmem>>, vector<1x256xf32>
    %25 = arith.addf %24, %23 : vector<1x256xf32>
    %c0_11 = arith.constant 0 : index
    %c0_12 = arith.constant 0 : index
    %26 = vector.load %arg7[%c0_11, %c0_12] : memref<1x256xf32, #tpu.memory_space<vmem>>, vector<1x256xf32>
    tpu.vector_store %arg7[%c0_11, %c0_12], %25 {strides = array<i32>} : memref<1x256xf32, #tpu.memory_space<vmem>>, vector<1x256xf32>,
    %c0_i32_13 = arith.constant 0 : i32
    %27 = arith.cmpi eq, %arg1, %c0_i32_13 : i32
    %28 = arith.extui %27 : i1 to i32
    %c0_i32_14 = arith.constant 0 : i32
    %29 = arith.cmpi ne, %28, %c0_i32_14 : i32
    scf.if %29 {
      %c0_15 = arith.constant 0 : index
      %c0_16 = arith.constant 0 : index
      %30 = vector.load %arg7[%c0_15, %c0_16] : memref<1x256xf32, #tpu.memory_space<vmem>>, vector<1x256xf32>
      %31 = vector.shape_cast %30 : vector<1x256xf32> to vector<1x1x256xf32>
      %cst_17 = arith.constant dense<0.000000e+00> : vector<1xf32>
      %32 = vector.multi_reduction <add>, %31, %cst_17 [1, 2] : vector<1x1x256xf32> to vector<1xf32>
      %33 = vector.shape_cast %32 : vector<1xf32> to vector<1x1x1xf32>
      %34 = vector.extract %33[0, 0, 0] : f32 from vector<1x1x1xf32>
      %35 = vector.broadcast %34 : f32 to vector<1x1xf32>
      %36 = vector.shape_cast %35 : vector<1x1xf32> to vector<1x1x1xf32>
      %c0_18 = arith.constant 0 : index
      %c0_19 = arith.constant 0 : index
      %c0_20 = arith.constant 0 : index
      %37 = vector.load %arg4[%c0_18, %c0_19, %c0_20] : memref<1x1x1xf32, #tpu.memory_space<vmem>>, vector<1x1x1xf32>
      tpu.vector_store %arg4[%c0_18, %c0_19, %c0_20], %36 {strides = array<i32>} : memref<1x1x1xf32, #tpu.memory_space<vmem>>, vector<1x1x1xf32>,
      %cst_21 = arith.constant 0.000000e+00 : f32
      %38 = vector.broadcast %cst_21 : f32 to vector<1x5x1xf32>
      %c0_22 = arith.constant 0 : index
      %c0_23 = arith.constant 0 : index
      %c0_24 = arith.constant 0 : index
      %39 = vector.load %arg5[%c0_22, %c0_23, %c0_24] : memref<1x5x1xf32, #tpu.memory_space<vmem>>, vector<1x5x1xf32>
      tpu.vector_store %arg5[%c0_22, %c0_23, %c0_24], %38 {strides = array<i32>} : memref<1x5x1xf32, #tpu.memory_space<vmem>>, vector<1x5x1xf32>,
      %cst_25 = arith.constant 0.000000e+00 : f32
      %40 = vector.broadcast %cst_25 : f32 to vector<1x5x1xf32>
      %c0_26 = arith.constant 0 : index
      %c0_27 = arith.constant 0 : index
      %c0_28 = arith.constant 0 : index
      %41 = vector.load %arg6[%c0_26, %c0_27, %c0_28] : memref<1x5x1xf32, #tpu.memory_space<vmem>>, vector<1x5x1xf32>
      tpu.vector_store %arg6[%c0_26, %c0_27, %c0_28], %40 {strides = array<i32>} : memref<1x5x1xf32, #tpu.memory_space<vmem>>, vector<1x5x1xf32>,
    } else {
    }
    return
  }
  func.func @transform_0(%arg0: i32, %arg1: i32) -> (i32, i32, i32) {
    %c0_i32 = arith.constant 0 : i32
    %c0_i32_0 = arith.constant 0 : i32
    return %arg0, %c0_i32, %arg1 : i32, i32, i32
  }
  func.func @transform_1(%arg0: i32, %arg1: i32) -> (i32, i32, i32) {
    %c0_i32 = arith.constant 0 : i32
    %c0_i32_0 = arith.constant 0 : i32
    return %arg0, %c0_i32, %arg1 : i32, i32, i32
  }
  func.func @transform_2(%arg0: i32, %arg1: i32) -> (i32, i32, i32) {
    %c0_i32 = arith.constant 0 : i32
    %c0_i32_0 = arith.constant 0 : i32
    %c0_i32_1 = arith.constant 0 : i32
    return %arg0, %c0_i32, %c0_i32_0 : i32, i32, i32
  }
  func.func @transform_3(%arg0: i32, %arg1: i32) -> (i32, i32, i32) {
    %c0_i32 = arith.constant 0 : i32
    %c0_i32_0 = arith.constant 0 : i32
    %c0_i32_1 = arith.constant 0 : i32
    return %arg0, %c0_i32, %c0_i32_0 : i32, i32, i32
  }
  func.func @transform_4(%arg0: i32, %arg1: i32) -> (i32, i32, i32) {
    %c0_i32 = arith.constant 0 : i32
    %c0_i32_0 = arith.constant 0 : i32
    %c0_i32_1 = arith.constant 0 : i32
    return %arg0, %c0_i32, %c0_i32_0 : i32, i32, i32
  }
}

</mosaic_0001>

<llo_original>
// kernel: combined_loss.1
$region0: #{combined_loss.1}
  #allocation0 [shape = 'u32[]', space=smem, size = 0x4, offset = 0x4, fixed_abs, tag = 'smem constant byte address 0x4 - core index']
  #allocation1 [shape = 'u32[72,128]{1,0:T(1,128)}', space=vmem, size = 0x9000, scoped, tag = 'internal scratch']
  #allocation2 [shape = 'f32[1,256]{1,0:T(1,128)}', space=vmem, size = 0x400, scoped, tag = 'scratch operand']
  #allocation3 [shape = 'f32[5,256]{1,0:T(8,128)}', space=vmem, size = 0x2000, scoped, tag = 'scratch operand']
  #allocation4 [shape = 'f32[5,256]{1,0:T(8,128)}', space=vmem, size = 0x2000, scoped, tag = 'scratch operand']
  %s0 = inlined_call_operand.vmem [shape: f32[2,5,256], index: 0, kind: input, shape index: {}]
  %s1 = inlined_call_operand.vmem [shape: s32[2,1,256], index: 1, kind: input, shape index: {}]
  %s2 = inlined_call_operand.vmem [shape: f32[2,1,1], index: 2, kind: output, shape index: {0}]
  %s3 = inlined_call_operand.hbm [shape: f32[2,5,1], index: 3, kind: output, shape index: {1}]
  %s4 = inlined_call_operand.hbm [shape: f32[2,5,1], index: 4, kind: output, shape index: {2}]
  %5 = xla_tuple %s2, %s3, %s4
  %s6 = sld [smem:[#allocation0]]
  $region65: #{combined_loss.1} parent=0
    _
  %s8 = ssub.s32 1, %s6
  %s9 = scalar_select 0, %s8, %s6
  $region1: #{combined_loss.1} parent=0
    #allocation5 [shape = 'u8[8192]{0}', space=vmem, size = 0x2000, scoped, tag = 'output window, operand 1']
    #allocation6 [shape = 's32[2]{0}', space=sflag, size = 0x8, scoped, tag = 'scoped memory for combined_loss.1']
    #allocation7 [shape = 'u8[8192]{0}', space=vmem, size = 0x2000, scoped, tag = 'output window, operand 2']
    #allocation8 [shape = 's32[2]{0}', space=sflag, size = 0x8, scoped, tag = 'scoped memory for combined_loss.1']
    %10 = vsyncpa [#allocation6], 0
    %s11 = scalar_lea.sflag [#allocation6], 1
    %12 = vsyncpa %s11, 0
    %13 = vsyncpa [#allocation8], 0
    %s14 = scalar_lea.sflag [#allocation8], 1
    %15 = vsyncpa %s14, 0
    loop: start=0, step=1, limit=4
    $region2: #{combined_loss.1} parent=1 // loop_pre_header
      _
    $region3: #{combined_loss.1} parent=1 // loop_header
      %s17 = sphi 0, %s21
      %p18 = scmp.ge.s32.totalorder %s17, 4
      %s24 = sphi 0, %s36
      %s25 = sphi 0, %s32
      %s26 = sphi 0, %s24
      %s27 = sphi 0, %s25
      %s28 = sphi 0, %s26
      %s29 = sphi 0, %s27
      %s41 = sphi 0, %s43
      %s44 = sphi 0, %s41
      %s45 = sphi 0, %s44
      %s61 = sphi 0, %s45
      %s69 = sphi 0, %s71
      %s72 = sphi 0, %s69
      %s73 = sphi 0, %s72
      %s89 = sphi 0, %s73
      %s95 = sphi 0, %s97
      %s98 = sphi 0, %s95
      %s99 = sphi 0, %s98
      %s115 = sphi 0, %s99
      %s121 = sphi 0, %s123
      %s124 = sphi 0, %s121
      %s125 = sphi 0, %s124
      %s141 = sphi 0, %s125
      %s147 = sphi 0, %s149
      %s150 = sphi 0, %s147
      %s151 = sphi 0, %s150
      %s167 = sphi 0, %s151
    $region4: #{combined_loss.1} parent=1 // loop_header_branch
      %20 = sbr.rel (%p18) target = $region8
    $region5: #{combined_loss.1} parent=1 // loop_body
      %s22 = ssub.s32 %s17, 1
      %s23 = ssub.s32 %s17, 2
      %s30 = sadd.s32 1, %s25
      %p31 = scmp.ge.s32.totalorder %s30, 1
      %s32 = scalar_select %p31, 0, %s30
      %s33 = sadd.s32 1, %s24
      %s34 = scalar_select %p31, %s33, %s24
      %p35 = scmp.ge.s32.totalorder %s34, 2
      %s36 = scalar_select %p35, 0, %s34
      %s37 = ssub.s32 %s24, %s36
      %s38 = ssub.s32 %s25, %s32
      %s39 = sor.u32 %s37, %s38
      %p40 = scmp.eq.s32.totalorder %s39, 0
      %s42 = sadd.s32 %s41, 1
      %s43 = scalar_select %p40, %s41, %s42
      %p46 = pneg %p40
      %p47 = scmp.eq.s32.totalorder %s17, 1
      %p48 = por %p46, %p47
      %p49 = scmp.ne.s32.totalorder %s41, %s44
      %p50 = scmp.eq.s32.totalorder %s17, 0
      %p51 = por %p49, %p50
      %p52 = scmp.ne.s32.totalorder %s41, %s44
      %p53 = scmp.eq.s32.totalorder %s22, 1
      %p54 = por %p52, %p53
      %p55 = scmp.ne.s32.totalorder %s44, %s45
      %p56 = scmp.eq.s32.totalorder %s22, 0
      %p57 = por %p55, %p56
      %p58 = scmp.ne.s32.totalorder %s44, %s45
      %p59 = scmp.eq.s32.totalorder %s23, 1
      %p60 = por %p58, %p59
      %p62 = scmp.ne.s32.totalorder %s45, %s61
      %p63 = scmp.eq.s32.totalorder %s23, 0
      %p64 = por %p62, %p63
      %s65 = ssub.s32 %s24, %s36
      %s66 = ssub.s32 %s25, %s32
      %s67 = sor.u32 %s65, %s66
      %p68 = scmp.eq.s32.totalorder %s67, 0
      %s70 = sadd.s32 %s69, 1
      %s71 = scalar_select %p68, %s69, %s70
      %p74 = pneg %p68
      %p75 = scmp.eq.s32.totalorder %s17, 1
      %p76 = por %p74, %p75
      %p77 = scmp.ne.s32.totalorder %s69, %s72
      %p78 = scmp.eq.s32.totalorder %s17, 0
      %p79 = por %p77, %p78
      %p80 = scmp.ne.s32.totalorder %s69, %s72
      %p81 = scmp.eq.s32.totalorder %s22, 1
      %p82 = por %p80, %p81
      %p83 = scmp.ne.s32.totalorder %s72, %s73
      %p84 = scmp.eq.s32.totalorder %s22, 0
      %p85 = por %p83, %p84
      %p86 = scmp.ne.s32.totalorder %s72, %s73
      %p87 = scmp.eq.s32.totalorder %s23, 1
      %p88 = por %p86, %p87
      %p90 = scmp.ne.s32.totalorder %s73, %s89
      %p91 = scmp.eq.s32.totalorder %s23, 0
      %p92 = por %p90, %p91
      %s93 = ssub.s32 %s24, %s36
      %p94 = scmp.eq.s32.totalorder %s93, 0
      %s96 = sadd.s32 %s95, 1
      %s97 = scalar_select %p94, %s95, %s96
      %p100 = pneg %p94
      %p101 = scmp.eq.s32.totalorder %s17, 1
      %p102 = por %p100, %p101
      %p103 = scmp.ne.s32.totalorder %s95, %s98
      %p104 = scmp.eq.s32.totalorder %s17, 0
      %p105 = por %p103, %p104
      %p106 = scmp.ne.s32.totalorder %s95, %s98
      %p107 = scmp.eq.s32.totalorder %s22, 1
      %p108 = por %p106, %p107
      %p109 = scmp.ne.s32.totalorder %s98, %s99
      %p110 = scmp.eq.s32.totalorder %s22, 0
      %p111 = por %p109, %p110
      %p112 = scmp.ne.s32.totalorder %s98, %s99
      %p113 = scmp.eq.s32.totalorder %s23, 1
      %p114 = por %p112, %p113
      %p116 = scmp.ne.s32.totalorder %s99, %s115
      %p117 = scmp.eq.s32.totalorder %s23, 0
      %p118 = por %p116, %p117
      %s119 = ssub.s32 %s24, %s36
      %p120 = scmp.eq.s32.totalorder %s119, 0
      %s122 = sadd.s32 %s121, 1
      %s123 = scalar_select %p120, %s121, %s122
      %p126 = pneg %p120
      %p127 = scmp.eq.s32.totalorder %s17, 1
      %p128 = por %p126, %p127
      %p129 = scmp.ne.s32.totalorder %s121, %s124
      %p130 = scmp.eq.s32.totalorder %s17, 0
      %p131 = por %p129, %p130
      %p132 = scmp.ne.s32.totalorder %s121, %s124
      %p133 = scmp.eq.s32.totalorder %s22, 1
      %p134 = por %p132, %p133
      %p135 = scmp.ne.s32.totalorder %s124, %s125
      %p136 = scmp.eq.s32.totalorder %s22, 0
      %p137 = por %p135, %p136
      %p138 = scmp.ne.s32.totalorder %s124, %s125
      %p139 = scmp.eq.s32.totalorder %s23, 1
      %p140 = por %p138, %p139
      %p142 = scmp.ne.s32.totalorder %s125, %s141
      %p143 = scmp.eq.s32.totalorder %s23, 0
      %p144 = por %p142, %p143
      %s145 = ssub.s32 %s24, %s36
      %p146 = scmp.eq.s32.totalorder %s145, 0
      %s148 = sadd.s32 %s147, 1
      %s149 = scalar_select %p146, %s147, %s148
      %p152 = pneg %p146
      %p153 = scmp.eq.s32.totalorder %s17, 1
      %p154 = por %p152, %p153
      %p155 = scmp.ne.s32.totalorder %s147, %s150
      %p156 = scmp.eq.s32.totalorder %s17, 0
      %p157 = por %p155, %p156
      %p158 = scmp.ne.s32.totalorder %s147, %s150
      %p159 = scmp.eq.s32.totalorder %s22, 1
      %p160 = por %p158, %p159
      %p161 = scmp.ne.s32.totalorder %s150, %s151
      %p162 = scmp.eq.s32.totalorder %s22, 0
      %p163 = por %p161, %p162
      %p164 = scmp.ne.s32.totalorder %s150, %s151
      %p165 = scmp.eq.s32.totalorder %s23, 1
      %p166 = por %p164, %p165
      %p168 = scmp.ne.s32.totalorder %s151, %s167
      %p169 = scmp.eq.s32.totalorder %s23, 0
      %p170 = por %p168, %p169
      %p171 = scmp.le.s32.totalorder 1, %s17
      %p172 = scmp.lt.s32.totalorder %s17, 3
      %p173 = pnand %p171, %p172
      %p174 = pneg %p173
      // Predicated region
      $region9: #{combined_loss.1} parent=5 // pred_check
        _
      $region10: #{combined_loss.1} parent=5 // pred_check_branch
        %176 = sbr.rel (%p173) target = $region12
      $region11: #{combined_loss.1} parent=5 // pred_region
        %s177 = ssub.s32 %s17, 1
      $region12: #{combined_loss.1} parent=5 // pred_fallthru
        _
      %p178 = scmp.lt.s32.totalorder %s17, 2
      // Predicated region
      $region13: #{combined_loss.1} parent=5 // pred_check
        %p179 = pneg %p178
      $region14: #{combined_loss.1} parent=5 // pred_check_branch
        %181 = sbr.rel (%p179) target = $region16
      $region15: #{combined_loss.1} parent=5 // pred_region
        // Predicated region
        $region17: #{combined_loss.1} parent=15 // pred_check
          %p182 = pneg %p51
        $region18: #{combined_loss.1} parent=15 // pred_check_branch
          %184 = sbr.rel (%p182) target = $region20
        $region19: #{combined_loss.1} parent=15 // pred_region
          %s185 = smul.u32 2, %s25
          %p186 = scmp.lt.s32.totalorder %s24, 1
          %s187 = scalar_select %p186, %s24, 1
          %p188 = scmp.lt.s32.totalorder %s185, 1
          %s189 = scalar_select %p188, %s185, 1
          %s190 = smul.addr %s187, 2
          %s191 = sadd.s32 %s189, %s190
          %s192 = smul.addr %s191, 8
          %s193 = scalar_lea.vmem %s0, %s192
          %s194 = smul.u32 2, %s25
        $region20: #{combined_loss.1} parent=15 // pred_fallthru
          _
        // Predicated region
        $region21: #{combined_loss.1} parent=15 // pred_check
          %p195 = pneg %p79
        $region22: #{combined_loss.1} parent=15 // pred_check_branch
          %197 = sbr.rel (%p195) target = $region24
        $region23: #{combined_loss.1} parent=15 // pred_region
          %s198 = smul.u32 2, %s25
          %p199 = scmp.lt.s32.totalorder %s24, 1
          %s200 = scalar_select %p199, %s24, 1
          %p201 = scmp.lt.s32.totalorder %s198, 1
          %s202 = scalar_select %p201, %s198, 1
          %s203 = smul.addr %s200, 2
          %s204 = sadd.s32 %s202, %s203
          %s205 = scalar_lea.vmem %s1, %s204
          %s206 = smul.u32 2, %s25
        $region24: #{combined_loss.1} parent=15 // pred_fallthru
          _
      $region16: #{combined_loss.1} parent=5 // pred_fallthru
        _
      %p207 = scmp.le.s32.totalorder 1, %s17
      %p208 = scmp.lt.s32.totalorder %s17, 3
      %p209 = pnand %p207, %p208
      %p210 = pneg %p209
      // Predicated region
      $region25: #{combined_loss.1} parent=5 // pred_check
        _
      $region26: #{combined_loss.1} parent=5 // pred_check_branch
        %212 = sbr.rel (%p209) target = $region28
      $region27: #{combined_loss.1} parent=5 // pred_region
        %s213 = ssub.s32 %s17, 1
        %s214 = smul.u32 2, %s27
        %p215 = scmp.lt.s32.totalorder %s26, 1
        %s216 = scalar_select %p215, %s26, 1
        %p217 = scmp.lt.s32.totalorder %s214, 1
        %s218 = scalar_select %p217, %s214, 1
        %s219 = smul.addr %s216, 2
        %s220 = sadd.s32 %s218, %s219
        %s221 = smul.addr %s220, 8
        %s222 = scalar_lea.vmem %s0, %s221
        %p223 = pneg %p57
        %p224 = pneg %p54
        %s225 = smul.u32 2, %s27
        %p226 = scmp.lt.s32.totalorder %s26, 1
        %s227 = scalar_select %p226, %s26, 1
        %p228 = scmp.lt.s32.totalorder %s225, 1
        %s229 = scalar_select %p228, %s225, 1
        %s230 = smul.addr %s227, 2
        %s231 = sadd.s32 %s229, %s230
        %s232 = scalar_lea.vmem %s1, %s231
        %p233 = pneg %p85
        %p234 = pneg %p82
        %p235 = pneg %p111
        %p236 = pneg %p108
        %p237 = scmp.lt.s32.totalorder %s26, 1
        %s238 = scalar_select %p237, %s26, 1
        %s239 = scalar_lea.vmem %s2, %s238
        %p240 = pneg %p137
        %p241 = pneg %p134
        %s242 = sand.u32 %s124, 1
        %s243 = scalar_lea.sflag [#allocation6], %s242
        %s244 = sand.u32 %s124, 1
        %s245 = smul.addr %s244, 8
        %s246 = scalar_lea.vmem [#allocation5], %s245
        %p247 = pneg %p163
        %p248 = pneg %p160
        %s249 = sand.u32 %s150, 1
        %s250 = scalar_lea.sflag [#allocation8], %s249
        %s251 = sand.u32 %s150, 1
        %s252 = smul.addr %s251, 8
        %s253 = scalar_lea.vmem [#allocation7], %s252
        %s254 = smul.u32 2, %s27
        %p255 = scmp.lt.s32.totalorder %s26, 1
        %s256 = scalar_select %p255, %s26, 1
        %p257 = scmp.lt.s32.totalorder %s254, 1
        %s258 = scalar_select %p257, %s254, 1
        %s259 = smul.addr %s256, 2
        %s260 = sadd.s32 %s258, %s259
        %s261 = smul.addr %s260, 8
        %s262 = scalar_lea.vmem %s0, %s261
        %s263 = smul.u32 2, %s27
        %s264 = smul.u32 2, %s27
        %p265 = scmp.lt.s32.totalorder %s26, 1
        %s266 = scalar_select %p265, %s26, 1
        %p267 = scmp.lt.s32.totalorder %s264, 1
        %s268 = scalar_select %p267, %s264, 1
        %s269 = smul.addr %s266, 2
        %s270 = sadd.s32 %s268, %s269
        %s271 = scalar_lea.vmem %s1, %s270
        %s272 = smul.u32 2, %s27
        %p273 = scmp.lt.s32.totalorder %s26, 1
        %s274 = scalar_select %p273, %s26, 1
        %s275 = scalar_lea.vmem %s2, %s274
        %p276 = scmp.eq.s32.totalorder %s27, 0
        // Predicated region
        $region29: #{combined_loss.1} parent=27 // pred_check
          %p277 = pneg %p276
        $region30: #{combined_loss.1} parent=27 // pred_check_branch
          %279 = sbr.rel (%p277) target = $region32
        $region31: #{combined_loss.1} parent=27 // pred_region
          %v280 = vlaneseq
          %vm281 = vcmp.ge.s32.totalorder %v280, 0
          %vm282 = vcmp.lt.s32.totalorder %v280, 256
          %vm283 = vmand %vm281, %vm282
          %284 = vst.msk [vmem:[#allocation2] sm:$0x3] %vm283, 0.0
        $region32: #{combined_loss.1} parent=27 // pred_fallthru
          _
        %v285 = vld [vmem:[%s262] sm:$0x1f]
        %v286 = vld [vmem:[%s262 + $0x8] sm:$0x1f]
        %v287 = vld [vmem:[%s271] sm:$0x3]
        %v288 = vlaneseq
        %v289 = vshrl.u32 %v288, 7
        %v290 = vperm.slane %v287, 0
        %v291 = vperm.slane %v287, 1
        %vm292 = vcmp.eq.s32.totalorder %v289, %v290
        %vm293 = vcmp.eq.s32.totalorder %v289, %v291
        %vm294 = vcmask 1044480
        %v295 = vsel %vm294, %v285, -inf
        %v296 = vrot.slane %v295, 4
        %v297 = vmax.f32 %v295, %v296
        %v298 = vrot.slane %v297, 2
        %v299 = vmax.f32 %v297, %v298
        %v300 = vrot.slane %v299, 1
        %v301 = vmax.f32 %v299, %v300
        %v302 = vsel %vm294, %v286, -inf
        %v303 = vrot.slane %v302, 4
        %v304 = vmax.f32 %v302, %v303
        %v305 = vrot.slane %v304, 2
        %v306 = vmax.f32 %v304, %v305
        %v307 = vrot.slane %v306, 1
        %v308 = vmax.f32 %v306, %v307
        %v309 = vsub.f32 %v285, %v301
        %v310 = vsub.f32 %v286, %v308
        %v311 = vmul.f32 %v309, 1.442695
        %v312 = vpow.pop %v311
        %v313 = vmul.f32 %v310, 1.442695
        %v314 = vpow.pop %v313
        %v315 = vsel %vm294, %v312, 0.0
        %v316 = vrot.slane %v315, 4
        %v317 = vadd.f32 %v315, %v316
        %v318 = vrot.slane %v317, 2
        %v319 = vadd.f32 %v317, %v318
        %v320 = vrot.slane %v319, 1
        %v321 = vadd.f32 %v319, %v320
        %v322 = vsel %vm294, %v314, 0.0
        %v323 = vrot.slane %v322, 4
        %v324 = vadd.f32 %v322, %v323
        %v325 = vrot.slane %v324, 2
        %v326 = vadd.f32 %v324, %v325
        %v327 = vrot.slane %v326, 1
        %v328 = vadd.f32 %v326, %v327
        %v329 = vlog2.pop %v321
        %v330 = vmul.f32 %v329, 0.6931472
        %v331 = vlog2.pop %v328
        %v332 = vmul.f32 %v331, 0.6931472
        %v333 = vadd.f32 %v301, %v330
        %v334 = vadd.f32 %v308, %v332
        %v335 = vsel %vm292, %v285, 0.0
        %v336 = vsel %vm293, %v286, 0.0
        %v337 = vsel %vm294, %v335, 0.0
        %v338 = vrot.slane %v337, 4
        %v339 = vadd.f32 %v337, %v338
        %v340 = vrot.slane %v339, 2
        %v341 = vadd.f32 %v339, %v340
        %v342 = vrot.slane %v341, 1
        %v343 = vadd.f32 %v341, %v342
        %v344 = vsel %vm294, %v336, 0.0
        %v345 = vrot.slane %v344, 4
        %v346 = vadd.f32 %v344, %v345
        %v347 = vrot.slane %v346, 2
        %v348 = vadd.f32 %v346, %v347
        %v349 = vrot.slane %v348, 1
        %v350 = vadd.f32 %v348, %v349
        %v351 = vsub.f32 %v333, %v343
        %v352 = vsub.f32 %v334, %v350
        %v353 = vld [vmem:[#allocation2] sm:$0x3]
        %v356 = vrot.slane %v352, 7
        %vm357 = vcmask 1040384
        %v358 = vsel %vm357, %v351, %v356
        %v360 = vadd.f32 %v353, %v358
        %v361 = vlaneseq
        %vm362 = vcmp.ge.s32.totalorder %v361, 0
        %vm363 = vcmp.lt.s32.totalorder %v361, 256
        %vm364 = vmand %vm362, %vm363
        %365 = vst.msk [vmem:[#allocation2] sm:$0x3] %vm364, %v360
        // Predicated region
        $region33: #{combined_loss.1} parent=27 // pred_check
          %p366 = pneg %p276
        $region34: #{combined_loss.1} parent=27 // pred_check_branch
          %368 = sbr.rel (%p366) target = $region36
        $region35: #{combined_loss.1} parent=27 // pred_region
          %v369 = vld [vmem:[#allocation2] sm:$0x3]
          %v371 = vperm.slane %v369, 0
          %v372 = vperm.slane %v369, 1
          %v375 = vsel %vm357, %v371, 0.0
          %v376 = vsel %vm357, %v372, 0.0
          %v377 = vadd.f32 %v375, %v376
          %378 = vadd.xlane.f32.xlu0 %v377
          %v379 = vpop.xlane.xlu0 %378
          %v380 = vrot.slane %v379, 4
          %v381 = vadd.f32 %v379, %v380
          %v382 = vrot.slane %v381, 2
          %v383 = vadd.f32 %v381, %v382
          %v384 = vrot.slane %v383, 1
          %v385 = vadd.f32 %v383, %v384
          %s386 = vtos %v385
          %v387 = vstv %s386
          %vm388 = vcmask 0
          %389 = vst.msk [vmem:[%s275] sm:$0x1] %vm388, %v387
          %vm390 = vcmask 4096
          %391 = vst.msk [vmem:[%s246] sm:$0x1f] %vm390, 0.0
          %392 = vst.msk [vmem:[%s253] sm:$0x1f] %vm390, 0.0
        $region36: #{combined_loss.1} parent=27 // pred_fallthru
          _
        %p393 = scmp.lt.s32.totalorder %s26, 1
        %s394 = scalar_select %p393, %s26, 1
        %s395 = scalar_lea.vmem %s2, %s394
        %s396 = sand.u32 %s124, 1
        %s397 = scalar_lea.sflag [#allocation6], %s396
        %s398 = sand.u32 %s124, 1
        %s399 = smul.addr %s398, 8
        %s400 = scalar_lea.vmem [#allocation5], %s399
        %s401 = sand.u32 %s150, 1
        %s402 = scalar_lea.sflag [#allocation8], %s401
        %s403 = sand.u32 %s150, 1
        %s404 = smul.addr %s403, 8
        %s405 = scalar_lea.vmem [#allocation7], %s404
        // Predicated region
        $region37: #{combined_loss.1} parent=27 // pred_check
          %p406 = pneg %p108
        $region38: #{combined_loss.1} parent=27 // pred_check_branch
          %408 = sbr.rel (%p406) target = $region40
        $region39: #{combined_loss.1} parent=27 // pred_region
          _
        $region40: #{combined_loss.1} parent=27 // pred_fallthru
          _
        // Predicated region
        $region41: #{combined_loss.1} parent=27 // pred_check
          %p409 = pneg %p134
        $region42: #{combined_loss.1} parent=27 // pred_check_branch
          %411 = sbr.rel (%p409) target = $region44
        $region43: #{combined_loss.1} parent=27 // pred_region
          %413 = vsyncadd %s397, 0
          %s414 = smul.addr %s26, 8
          %s415 = scalar_lea.hbm %s3, %s414
          %s417 = sshll.u32 %s400, 4
          %s418 = int_to_ptr.vmem [resolvable:$true] %s417
          %s419 = sshll.u32 %s415, 4
          %s420 = int_to_ptr.hbm [resolvable:$true] %s419
          %422 = dma.vmem_to_hbm [thread:$0]  %s418, 128, %s420, %s397
        $region44: #{combined_loss.1} parent=27 // pred_fallthru
          _
        // Predicated region
        $region45: #{combined_loss.1} parent=27 // pred_check
          %p423 = pneg %p160
        $region46: #{combined_loss.1} parent=27 // pred_check_branch
          %425 = sbr.rel (%p423) target = $region48
        $region47: #{combined_loss.1} parent=27 // pred_region
          %427 = vsyncadd %s402, 0
          %s428 = smul.addr %s26, 8
          %s429 = scalar_lea.hbm %s4, %s428
          %s431 = sshll.u32 %s405, 4
          %s432 = int_to_ptr.vmem [resolvable:$true] %s431
          %s433 = sshll.u32 %s429, 4
          %s434 = int_to_ptr.hbm [resolvable:$true] %s433
          %436 = dma.vmem_to_hbm [thread:$0]  %s432, 128, %s434, %s402
        $region48: #{combined_loss.1} parent=27 // pred_fallthru
          _
      $region28: #{combined_loss.1} parent=5 // pred_fallthru
        _
      %p437 = scmp.le.s32.totalorder 2, %s17
      // Predicated region
      $region49: #{combined_loss.1} parent=5 // pred_check
        %p438 = pneg %p437
      $region50: #{combined_loss.1} parent=5 // pred_check_branch
        %440 = sbr.rel (%p438) target = $region52
      $region51: #{combined_loss.1} parent=5 // pred_region
        %s441 = ssub.s32 %s17, 2
        // Predicated region
        $region53: #{combined_loss.1} parent=51 // pred_check
          %p442 = pneg %p114
        $region54: #{combined_loss.1} parent=51 // pred_check_branch
          %444 = sbr.rel (%p442) target = $region56
        $region55: #{combined_loss.1} parent=51 // pred_region
          %p445 = scmp.lt.s32.totalorder %s28, 1
          %s446 = scalar_select %p445, %s28, 1
          %s447 = scalar_lea.vmem %s2, %s446
        $region56: #{combined_loss.1} parent=51 // pred_fallthru
          _
        // Predicated region
        $region57: #{combined_loss.1} parent=51 // pred_check
          %p448 = pneg %p140
        $region58: #{combined_loss.1} parent=51 // pred_check_branch
          %450 = sbr.rel (%p448) target = $region60
        $region59: #{combined_loss.1} parent=51 // pred_region
          %s451 = sand.u32 %s125, 1
          %s452 = scalar_lea.sflag [#allocation6], %s451
          %s453 = sand.u32 %s125, 1
          %s454 = smul.addr %s453, 8
          %s455 = scalar_lea.vmem [#allocation5], %s454
          %457 = dma.done %s452, 128
        $region60: #{combined_loss.1} parent=51 // pred_fallthru
          _
        // Predicated region
        $region61: #{combined_loss.1} parent=51 // pred_check
          %p458 = pneg %p166
        $region62: #{combined_loss.1} parent=51 // pred_check_branch
          %460 = sbr.rel (%p458) target = $region64
        $region63: #{combined_loss.1} parent=51 // pred_region
          %s461 = sand.u32 %s151, 1
          %s462 = scalar_lea.sflag [#allocation8], %s461
          %s463 = sand.u32 %s151, 1
          %s464 = smul.addr %s463, 8
          %s465 = scalar_lea.vmem [#allocation7], %s464
          %467 = dma.done %s462, 128
        $region64: #{combined_loss.1} parent=51 // pred_fallthru
          _
      $region52: #{combined_loss.1} parent=5 // pred_fallthru
        _
    $region6: #{combined_loss.1} parent=1 // loop_footer
      %s21 = sadd.s32 1, %s17
    $region7: #{combined_loss.1} parent=1 // loop_footer_branch
      %16 = sbr.rel target = $region3
    $region8: #{combined_loss.1} parent=1 // loop_exit
      _
    %468 = vsyncpa [#allocation6], 1
    %s469 = scalar_lea.sflag [#allocation6], 1
    %470 = vsyncpa %s469, 1
    %471 = vsyncpa [#allocation8], 1
    %s472 = scalar_lea.sflag [#allocation8], 1
    %473 = vsyncpa %s472, 1

</llo_original>
